<compile_context>
chip_gen: v7x
topology: tpu7x:2x2x1
jax: 0.10.0
libtpu: 0.0.40
codegen_flags: <defaults>
</compile_context>

<pallas_src>
import functools

import numpy as np
import jax
import jax.numpy as jnp
from jax.experimental import pallas as pl
from jax.experimental.pallas import tpu as pltpu


OUT_SIZE = 8
SIZES = (4, 8, 16)


def _round_up(x: int, m: int) -> int:
    return ((x + m - 1) // m) * m


def _bilinear_matrix(src_size: int, dst_size: int) -> np.ndarray:
    """[dst_size, src_size] matrix W with (W @ v) = bilinear resize of v.

    PyTorch / torchvision semantics: half-pixel centers, align_corners=False,
    no antialiasing.  src = (dst + 0.5) * scale - 0.5, clamped at 0;
    neighbours clamped to [0, src_size - 1].
    """
    scale = src_size / dst_size
    w = np.zeros((dst_size, src_size), dtype=np.float32)
    for j in range(dst_size):
        src = (j + 0.5) * scale - 0.5
        src = max(src, 0.0)
        i0 = int(np.floor(src))
        i0 = min(i0, src_size - 1)
        i1 = min(i0 + 1, src_size - 1)
        frac = src - i0
        w[j, i0] += 1.0 - frac
        w[j, i1] += frac
    return w


def _build_stacked_weight(sizes, out_size: int, s_max: int, k_pad: int) -> np.ndarray:
    """Per-scale Kronecker weights, stacked: (n, k_pad, out_size**2).

    out[s, row, oy*o+ox] = sum_{y,x} emb_s[oy, y] * emb_s[ox, x]
                                     * crop_flat[row, y*s_max + x]
    where emb_s is the (out, s_max) bilinear matrix of scale s embedded at its
    centered sub-crop offset inside the s_max crop.
    """
    o2 = out_size * out_size
    n = len(sizes)
    w = np.zeros((n, k_pad, o2), dtype=np.float32)
    for idx, s in enumerate(sizes):
        wb = _bilinear_matrix(s, out_size)                 # (out, s)
        off = s_max // 2 - s // 2                          # centered sub-crop offset
        emb = np.zeros((out_size, s_max), dtype=np.float32)
        emb[:, off:off + s] = wb                           # (out, s_max)
        w[idx, : s_max * s_max, :] = np.kron(emb, emb).T   # (s_max^2, out^2)
    return w


def _fovea_kernel(w_ref, crop_ref, out_ref):
    """out[s, rows, :] = crop[rows, :] @ w[s]  for each (static) scale s."""
    x = crop_ref[...]
    for s in range(out_ref.shape[0]):                      # n is static -> unrolled
        out_ref[s] = jnp.dot(
            x, w_ref[s], preferred_element_type=jnp.float32
        ).astype(out_ref.dtype)


@functools.partial(jax.jit, static_argnames=("out_size", "sizes", "use_bf16_compute"))
def fovea_cropper_forward(x: jax.Array, out_size: int, sizes: tuple,
                          use_bf16_compute: bool = False) -> jax.Array:
    """JAX/Pallas equivalent of FoveaCropper.forward.

    x: [B, C, H, W]  ->  output: [len(sizes) * B, C, out_size, out_size]
    (crops stacked along a leading "n" axis then merged with batch, i.e.
     rearrange 'n b c h w -> (n b) c h w').

    Output dtype: x.dtype for floating inputs; integer inputs are promoted to
    float32 (documented contract).  use_bf16_compute=True casts the crop and
    weights to bf16 (weights for the default sizes are exact in bf16) to halve
    input-read bandwidth; output stays in the input's float dtype.
    """
    b, c, h, w = x.shape
    n = len(sizes)
    s_max = max(sizes)
    o2 = out_size * out_size

    if x.dtype == jnp.bfloat16 or use_bf16_compute:
        compute_dtype = jnp.bfloat16
    else:
        compute_dtype = jnp.float32
    out_dtype = x.dtype if jnp.issubdtype(x.dtype, jnp.floating) else jnp.float32

    # Single center crop at the largest size (covers all smaller crops).
    top = h // 2 - s_max // 2
    left = w // 2 - s_max // 2

    bc = b * c
    k_dim = s_max * s_max
    # Lane-dense contraction dim (256 for the default sizes -> one MXU tile).
    k_pad = _round_up(max(k_dim, 128), 128)

    # Crop + flatten (+ cast / K-pad): slice of a strided window must
    # materialize once anyway; XLA fuses slice+reshape+convert(+pad) into one
    # copy feeding pallas_call.  No bc-axis padding.
    crop_flat = x[:, :, top:top + s_max, left:left + s_max].reshape(bc, k_dim)
    crop_flat = crop_flat.astype(compute_dtype)
    if k_pad != k_dim:
        crop_flat = jnp.pad(crop_flat, ((0, 0), (0, k_pad - k_dim)))

    # bc tiling: large tiles to amortize the ~0.35us per-grid-step overhead,
    # rounded to the dtype's sublane multiple, capped at ceil(bc/2) so the
    # "parallel" axis keeps >=2 steps for v7x's two TensorCores when bc is big.
    # Double-buffered footprint at the max tile is ~7 MiB (crop 2x2 MiB,
    # out 2x1.5 MiB, weight 0.2 MiB) -> fits v5e's 16 MiB default scoped VMEM.
    sublane = 16 if compute_dtype == jnp.bfloat16 else 8
    target = 4096 if compute_dtype == jnp.bfloat16 else 2048
    half_bc = _round_up(max(1, -(-bc // 2)), sublane)
    bc_tile = max(sublane, min(target, half_bc))
    grid = (pl.cdiv(bc, bc_tile),)

    # Stacked per-scale weights, whole-array resident in VMEM (single buffer,
    # DMA'd once for the entire kernel).
    w_all = jnp.asarray(
        _build_stacked_weight(sizes, out_size, s_max, k_pad), dtype=compute_dtype)

    out_3d = pl.pallas_call(
        _fovea_kernel,
        out_shape=jax.ShapeDtypeStruct((n, bc, o2), out_dtype),
        grid=grid,
        in_specs=[
            pl.BlockSpec(memory_space=pltpu.MemorySpace.VMEM),   # weight (resident)
            pl.BlockSpec((bc_tile, k_pad), lambda i: (i, 0)),    # crop tile
        ],
        # Output written scale-major so the final rearrange is a free reshape
        # (no post-kernel slice or transpose HBM passes).  Last dim = o2 equals
        # the full array dim, so the <128-lane store is a legal masked vst.
        out_specs=pl.BlockSpec((n, bc_tile, o2), lambda i: (0, i, 0)),
        compiler_params=pltpu.CompilerParams(
            dimension_semantics=("parallel",)),
    )(w_all, crop_flat)

    # (n, b*c, o*o) -> (n*b, c, o, o): pure reshape, identical memory order to
    # rearrange 'n b c h w -> (n b) c h w'.
    return out_3d.reshape(n * b, c, out_size, out_size)


def _reference_numpy(x: np.ndarray, out_size: int, sizes) -> np.ndarray:
    """Pure-numpy reference (same antialias=False bilinear semantics)."""
    b, c, h, w = x.shape
    outs = []
    for s in sizes:
        top = h // 2 - s // 2
        left = w // 2 - s // 2
        crop = x[:, :, top:top + s, left:left + s].astype(np.float32)
        wm = _bilinear_matrix(s, out_size)
        y = np.einsum("os,bcst,pt->bcop", wm, crop, wm)
        outs.append(y)
    return np.concatenate(outs, axis=0)   # (n*b, c, o, o)


if __name__ == "__main__":
    key = jax.random.PRNGKey(0)
    B, C, H, W = 2, 4, 16, 16
    x = jax.random.normal(key, (B, C, H, W), dtype=jnp.float32)

    out = fovea_cropper_forward(x, OUT_SIZE, tuple(SIZES))
    out = jax.block_until_ready(out)

    assert out.shape == (len(SIZES) * B, C, OUT_SIZE, OUT_SIZE), out.shape
    assert out.dtype == x.dtype

    # Full numerical check against a pure-numpy reference of the module.
    ref = _reference_numpy(np.asarray(x), OUT_SIZE, SIZES)
    np.testing.assert_allclose(np.asarray(out), ref, rtol=1e-5, atol=1e-5)

    # Sanity check: for s == out_size the bilinear resize is the identity, so
    # that block of the output must equal the raw center crop.
    s = OUT_SIZE
    idx = list(SIZES).index(s)
    top = H // 2 - s // 2
    left = W // 2 - s // 2
    ref_crop = np.asarray(x[:, :, top:top + s, left:left + s])
    got = np.asarray(out[idx * B:(idx + 1) * B])
    np.testing.assert_allclose(got, ref_crop, rtol=1e-5, atol=1e-5)

    # Optional bf16-compute fast path (f32 in, bf16 matmul, f32 out): looser
    # tolerance since the crop loses ~3 decimal digits.
    out_bf16 = fovea_cropper_forward(x, OUT_SIZE, tuple(SIZES), use_bf16_compute=True)
    out_bf16 = jax.block_until_ready(out_bf16)
    assert out_bf16.dtype == x.dtype
    np.testing.assert_allclose(np.asarray(out_bf16), ref, rtol=5e-2, atol=5e-2)

    print("KERNEL_OK")
</pallas_src>

<mosaic_0001>
module attributes {stable_mosaic.version = 11 : i64} {
  func.func @_fovea_kernel(%arg0: i32, %arg1: memref<3x256x64xf32, #tpu.memory_space<vmem>>, %arg2: memref<8x256xf32, #tpu.memory_space<vmem>>, %arg3: memref<3x8x64xf32, #tpu.memory_space<vmem>>) attributes {dimension_semantics = [#tpu.dimension_semantics<parallel>], iteration_bounds = array<i64: 1>, scalar_prefetch = 0 : i64, scratch_operands = 0 : i64, tpu.core_type = #tpu.core_type<tc>, window_params = [{pipeline_mode = #tpu.pipeline_mode<synchronous>, transform_indices = @transform_0, window_bounds = array<i64: 3, 256, 64>}, {transform_indices = @transform_1, window_bounds = array<i64: 8, 256>}, {transform_indices = @transform_2, window_bounds = array<i64: 3, 8, 64>}]} {
    %c0 = arith.constant 0 : index
    %c0_0 = arith.constant 0 : index
    %0 = vector.load %arg2[%c0, %c0_0] : memref<8x256xf32, #tpu.memory_space<vmem>>, vector<8x256xf32>
    %c0_1 = arith.constant 0 : index
    %c0_2 = arith.constant 0 : index
    %c0_3 = arith.constant 0 : index
    %1 = vector.load %arg1[%c0_1, %c0_2, %c0_3] : memref<3x256x64xf32, #tpu.memory_space<vmem>>, vector<1x256x64xf32>
    %2 = vector.shape_cast %1 : vector<1x256x64xf32> to vector<256x64xf32>
    %cst = arith.constant dense<0.000000e+00> : vector<8x64xf32>
    %3 = tpu.matmul %0, %2, %cst {dimension_numbers = #tpu.dot_dimension_numbers<[1], [0], [0], [1], [0, 0, 1, 1], [], []>} : vector<8x256xf32>, vector<256x64xf32>, vector<8x64xf32> -> vector<8x64xf32>
    %c0_4 = arith.constant 0 : index
    %c0_5 = arith.constant 0 : index
    %c0_6 = arith.constant 0 : index
    %4 = vector.load %arg3[%c0_4, %c0_5, %c0_6] : memref<3x8x64xf32, #tpu.memory_space<vmem>>, vector<1x8x64xf32>
    %5 = vector.shape_cast %4 : vector<1x8x64xf32> to vector<8x64xf32>
    %6 = vector.shape_cast %3 : vector<8x64xf32> to vector<1x8x64xf32>
    tpu.vector_store %arg3[%c0_4, %c0_5, %c0_6], %6 {strides = array<i32>} : memref<3x8x64xf32, #tpu.memory_space<vmem>>, vector<1x8x64xf32>,
    %c1 = arith.constant 1 : index
    %c0_7 = arith.constant 0 : index
    %c0_8 = arith.constant 0 : index
    %7 = vector.load %arg1[%c1, %c0_7, %c0_8] : memref<3x256x64xf32, #tpu.memory_space<vmem>>, vector<1x256x64xf32>
    %8 = vector.shape_cast %7 : vector<1x256x64xf32> to vector<256x64xf32>
    %cst_9 = arith.constant dense<0.000000e+00> : vector<8x64xf32>
    %9 = tpu.matmul %0, %8, %cst_9 {dimension_numbers = #tpu.dot_dimension_numbers<[1], [0], [0], [1], [0, 0, 1, 1], [], []>} : vector<8x256xf32>, vector<256x64xf32>, vector<8x64xf32> -> vector<8x64xf32>
    %c1_10 = arith.constant 1 : index
    %c0_11 = arith.constant 0 : index
    %c0_12 = arith.constant 0 : index
    %10 = vector.load %arg3[%c1_10, %c0_11, %c0_12] : memref<3x8x64xf32, #tpu.memory_space<vmem>>, vector<1x8x64xf32>
    %11 = vector.shape_cast %10 : vector<1x8x64xf32> to vector<8x64xf32>
    %12 = vector.shape_cast %9 : vector<8x64xf32> to vector<1x8x64xf32>
    tpu.vector_store %arg3[%c1_10, %c0_11, %c0_12], %12 {strides = array<i32>} : memref<3x8x64xf32, #tpu.memory_space<vmem>>, vector<1x8x64xf32>,
    %c2 = arith.constant 2 : index
    %c0_13 = arith.constant 0 : index
    %c0_14 = arith.constant 0 : index
    %13 = vector.load %arg1[%c2, %c0_13, %c0_14] : memref<3x256x64xf32, #tpu.memory_space<vmem>>, vector<1x256x64xf32>
    %14 = vector.shape_cast %13 : vector<1x256x64xf32> to vector<256x64xf32>
    %cst_15 = arith.constant dense<0.000000e+00> : vector<8x64xf32>
    %15 = tpu.matmul %0, %14, %cst_15 {dimension_numbers = #tpu.dot_dimension_numbers<[1], [0], [0], [1], [0, 0, 1, 1], [], []>} : vector<8x256xf32>, vector<256x64xf32>, vector<8x64xf32> -> vector<8x64xf32>
    %c2_16 = arith.constant 2 : index
    %c0_17 = arith.constant 0 : index
    %c0_18 = arith.constant 0 : index
    %16 = vector.load %arg3[%c2_16, %c0_17, %c0_18] : memref<3x8x64xf32, #tpu.memory_space<vmem>>, vector<1x8x64xf32>
    %17 = vector.shape_cast %16 : vector<1x8x64xf32> to vector<8x64xf32>
    %18 = vector.shape_cast %15 : vector<8x64xf32> to vector<1x8x64xf32>
    tpu.vector_store %arg3[%c2_16, %c0_17, %c0_18], %18 {strides = array<i32>} : memref<3x8x64xf32, #tpu.memory_space<vmem>>, vector<1x8x64xf32>,
    return
  }
  func.func @transform_0(%arg0: i32) -> (i32, i32, i32) {
    %c0_i32 = arith.constant 0 : i32
    %c0_i32_0 = arith.constant 0 : i32
    %c0_i32_1 = arith.constant 0 : i32
    %c0_i32_2 = arith.constant 0 : i32
    return %c0_i32, %c0_i32_0, %c0_i32_1 : i32, i32, i32
  }
  func.func @transform_1(%arg0: i32) -> (i32, i32) {
    %c0_i32 = arith.constant 0 : i32
    %c0_i32_0 = arith.constant 0 : i32
    return %arg0, %c0_i32 : i32, i32
  }
  func.func @transform_2(%arg0: i32) -> (i32, i32, i32) {
    %c0_i32 = arith.constant 0 : i32
    %c0_i32_0 = arith.constant 0 : i32
    %c0_i32_1 = arith.constant 0 : i32
    return %c0_i32, %arg0, %c0_i32_0 : i32, i32, i32
  }
}

</mosaic_0001>

<llo_original>
// kernel: fovea_cropper_forward.1
$region0: #{fovea_cropper_forward.1}
  #allocation0 [shape = 'u32[]', space=smem, size = 0x4, offset = 0x4, fixed_abs, tag = 'smem constant byte address 0x4 - core index']
  #allocation1 [shape = 'u32[144,128]{1,0:T(1,128)}', space=vmem, size = 0x12000, scoped, tag = 'internal scratch']
  %s0 = inlined_call_operand.hbm [shape: f32[3,256,64], index: 0, kind: input, shape index: {}]
  %s1 = inlined_call_operand.vmem [shape: f32[8,256], index: 1, kind: input, shape index: {}]
  %s2 = inlined_call_operand.vmem [shape: f32[3,8,64], index: 2, kind: output, shape index: {}]
  %s3 = sld [smem:[#allocation0]]
  $region22: #{fovea_cropper_forward.1} parent=0
    _
  %s5 = ssub.s32 1, %s3
  %s6 = scalar_select 0, %s5, %s3
  $region1: #{fovea_cropper_forward.1} parent=0
    #allocation2 [shape = 'u8[393216]{0}', space=vmem, size = 0x60000, scoped, tag = 'input window, operand 0, single buffered']
    #allocation3 [shape = 's32[1]{0}', space=sflag, size = 0x4, scoped, tag = 'scoped memory for fovea_cropper_forward.1']
    %7 = vsyncpa [#allocation3], 0
    // Predicated region
    $region2: #{fovea_cropper_forward.1} parent=1 // pred_check
      _
    $region3: #{fovea_cropper_forward.1} parent=1 // pred_check_branch
      %9 = sbr.rel (0) target = $region5
    $region4: #{fovea_cropper_forward.1} parent=1 // pred_region
      %s11 = ssub.s32 12288, 12288
      %12 = vsyncadd [#allocation3], %s11
      %s13 = sshll.u32 [#allocation2], 4
      %s14 = int_to_ptr.vmem [resolvable:$true] %s13
      %19 = dma.hbm_to_vmem [thread:$0]  %s0, 12288, %s14, [#allocation3], 128, 128, 8
    $region5: #{fovea_cropper_forward.1} parent=1 // pred_fallthru
      _
    // Predicated region
    $region6: #{fovea_cropper_forward.1} parent=1 // pred_check
      _
    $region7: #{fovea_cropper_forward.1} parent=1 // pred_check_branch
      %21 = sbr.rel (0) target = $region9
    $region8: #{fovea_cropper_forward.1} parent=1 // pred_region
      _
    $region9: #{fovea_cropper_forward.1} parent=1 // pred_fallthru
      _
    // Predicated region
    $region10: #{fovea_cropper_forward.1} parent=1 // pred_check
      _
    $region11: #{fovea_cropper_forward.1} parent=1 // pred_check_branch
      %23 = sbr.rel (0) target = $region13
    $region12: #{fovea_cropper_forward.1} parent=1 // pred_region
      %24 = dma.done [#allocation3], 12288
    $region13: #{fovea_cropper_forward.1} parent=1 // pred_fallthru
      _
    %v25 = vld [vmem:[%s1] sm:$0xff]
    %v26 = vld [vmem:[%s1 + $0x8] sm:$0xff]
    %v27 = vld [vmem:[#allocation2] sm:$0xff]
    %v28 = vld [vmem:[#allocation2 + $0x8] sm:$0xff]
    %v29 = vld [vmem:[#allocation2 + $0x10] sm:$0xff]
    %v30 = vld [vmem:[#allocation2 + $0x18] sm:$0xff]
    %v31 = vld [vmem:[#allocation2 + $0x20] sm:$0xff]
    %v32 = vld [vmem:[#allocation2 + $0x28] sm:$0xff]
    %v33 = vld [vmem:[#allocation2 + $0x30] sm:$0xff]
    %v34 = vld [vmem:[#allocation2 + $0x38] sm:$0xff]
    %v35 = vld [vmem:[#allocation2 + $0x40] sm:$0xff]
    %v36 = vld [vmem:[#allocation2 + $0x48] sm:$0xff]
    %v37 = vld [vmem:[#allocation2 + $0x50] sm:$0xff]
    %v38 = vld [vmem:[#allocation2 + $0x58] sm:$0xff]
    %v39 = vld [vmem:[#allocation2 + $0x60] sm:$0xff]
    %v40 = vld [vmem:[#allocation2 + $0x68] sm:$0xff]
    %v41 = vld [vmem:[#allocation2 + $0x70] sm:$0xff]
    %v42 = vld [vmem:[#allocation2 + $0x78] sm:$0xff]
    %v43 = vld [vmem:[#allocation2 + $0x80] sm:$0xff]
    %v44 = vld [vmem:[#allocation2 + $0x88] sm:$0xff]
    %v45 = vld [vmem:[#allocation2 + $0x90] sm:$0xff]
    %v46 = vld [vmem:[#allocation2 + $0x98] sm:$0xff]
    %v47 = vld [vmem:[#allocation2 + $0xa0] sm:$0xff]
    %v48 = vld [vmem:[#allocation2 + $0xa8] sm:$0xff]
    %v49 = vld [vmem:[#allocation2 + $0xb0] sm:$0xff]
    %v50 = vld [vmem:[#allocation2 + $0xb8] sm:$0xff]
    %v51 = vld [vmem:[#allocation2 + $0xc0] sm:$0xff]
    %v52 = vld [vmem:[#allocation2 + $0xc8] sm:$0xff]
    %v53 = vld [vmem:[#allocation2 + $0xd0] sm:$0xff]
    %v54 = vld [vmem:[#allocation2 + $0xd8] sm:$0xff]
    %v55 = vld [vmem:[#allocation2 + $0xe0] sm:$0xff]
    %v56 = vld [vmem:[#allocation2 + $0xe8] sm:$0xff]
    %v57 = vld [vmem:[#allocation2 + $0xf0] sm:$0xff]
    %v58 = vld [vmem:[#allocation2 + $0xf8] sm:$0xff]
    %59 = vmatprep.subr.mxu0 0.0
    %60 = vmatpush1.msra.mxu0 %v27
    %61 = vmatprep.subr.mxu0 0.0
    %62 = vmatpush1.msra.mxu0 %v28
    %63 = vmatprep.subr.mxu0 0.0
    %64 = vmatpush1.msra.mxu0 %v29
    %65 = vmatprep.subr.mxu0 0.0
    %66 = vmatpush1.msra.mxu0 %v30
    %67 = vmatprep.subr.mxu0 0.0
    %68 = vmatpush1.msra.mxu0 %v31
    %69 = vmatprep.subr.mxu0 0.0
    %70 = vmatpush1.msra.mxu0 %v32
    %71 = vmatprep.subr.mxu0 0.0
    %72 = vmatpush1.msra.mxu0 %v33
    %73 = vmatprep.subr.mxu0 0.0
    %74 = vmatpush1.msra.mxu0 %v34
    %75 = vmatprep.subr.mxu0 0.0
    %76 = vmatpush1.msra.mxu0 %v35
    %77 = vmatprep.subr.mxu0 0.0
    %78 = vmatpush1.msra.mxu0 %v36
    %79 = vmatprep.subr.mxu0 0.0
    %80 = vmatpush1.msra.mxu0 %v37
    %81 = vmatprep.subr.mxu0 0.0
    %82 = vmatpush1.msra.mxu0 %v38
    %83 = vmatprep.subr.mxu0 0.0
    %84 = vmatpush1.msra.mxu0 %v39
    %85 = vmatprep.subr.mxu0 0.0
    %86 = vmatpush1.msra.mxu0 %v40
    %87 = vmatprep.subr.mxu0 0.0
    %88 = vmatpush1.msra.mxu0 %v41
    %89 = vmatprep.subr.mxu0 0.0
    %90 = vmatpush1.msra.mxu0 %v42
    %91 = vmatprep.subr.mxu0 0.0
    %92 = vmatpush1.msra.mxu0 %v43
    %93 = vmatprep.subr.mxu0 0.0
    %94 = vmatpush1.msra.mxu0 %v44
    %95 = vmatprep.subr.mxu0 0.0
    %96 = vmatpush1.msra.mxu0 %v45
    %97 = vmatprep.subr.mxu0 0.0
    %98 = vmatpush1.msra.mxu0 %v46
    %99 = vmatprep.subr.mxu0 0.0
    %100 = vmatpush1.msra.mxu0 %v47
    %101 = vmatprep.subr.mxu0 0.0
    %102 = vmatpush1.msra.mxu0 %v48
    %103 = vmatprep.subr.mxu0 0.0
    %104 = vmatpush1.msra.mxu0 %v49
    %105 = vmatprep.subr.mxu0 0.0
    %106 = vmatpush1.msra.mxu0 %v50
    %107 = vmatprep.subr.mxu0 0.0
    %108 = vmatpush1.msra.mxu0 %v51
    %109 = vmatprep.subr.mxu0 0.0
    %110 = vmatpush1.msra.mxu0 %v52
    %111 = vmatprep.subr.mxu0 0.0
    %112 = vmatpush1.msra.mxu0 %v53
    %113 = vmatprep.subr.mxu0 0.0
    %114 = vmatpush1.msra.mxu0 %v54
    %115 = vmatprep.subr.mxu0 0.0
    %116 = vmatpush1.msra.mxu0 %v55
    %117 = vmatprep.subr.mxu0 0.0
    %118 = vmatpush1.msra.mxu0 %v56
    %119 = vmatprep.subr.mxu0 0.0
    %120 = vmatpush1.msra.mxu0 %v57
    %121 = vmatprep.subr.mxu0 0.0
    %122 = vmatpush1.msra.mxu0 %v58
    %123 = vmatprep.mubr.f32.mxu0 %v26
    %124 = vmatmul.mubr.f32.gmra.mrb[0].mxu0 %v25
    %v125 = vpop.f32.mrb[0].mxu0
    %v126 = vadd.f32 0.0, %v125
    %v127 = vpop.f32.mrb[0].mxu0
    %128 = vdwg.mxu0
    %vm129 = vcmask 523264
    %130 = vst.msk [vmem:[%s2] sm:$0xff] %vm129, %v126
    %s131 = scalar_lea.vmem [#allocation2], 256
    %v132 = vld [vmem:[%s131] sm:$0xff]
    %v133 = vld [vmem:[%s131 + $0x8] sm:$0xff]
    %v134 = vld [vmem:[%s131 + $0x10] sm:$0xff]
    %v135 = vld [vmem:[%s131 + $0x18] sm:$0xff]
    %v136 = vld [vmem:[%s131 + $0x20] sm:$0xff]
    %v137 = vld [vmem:[%s131 + $0x28] sm:$0xff]
    %v138 = vld [vmem:[%s131 + $0x30] sm:$0xff]
    %v139 = vld [vmem:[%s131 + $0x38] sm:$0xff]
    %v140 = vld [vmem:[%s131 + $0x40] sm:$0xff]
    %v141 = vld [vmem:[%s131 + $0x48] sm:$0xff]
    %v142 = vld [vmem:[%s131 + $0x50] sm:$0xff]
    %v143 = vld [vmem:[%s131 + $0x58] sm:$0xff]
    %v144 = vld [vmem:[%s131 + $0x60] sm:$0xff]
    %v145 = vld [vmem:[%s131 + $0x68] sm:$0xff]
    %v146 = vld [vmem:[%s131 + $0x70] sm:$0xff]
    %v147 = vld [vmem:[%s131 + $0x78] sm:$0xff]
    %v148 = vld [vmem:[%s131 + $0x80] sm:$0xff]
    %v149 = vld [vmem:[%s131 + $0x88] sm:$0xff]
    %v150 = vld [vmem:[%s131 + $0x90] sm:$0xff]
    %v151 = vld [vmem:[%s131 + $0x98] sm:$0xff]
    %v152 = vld [vmem:[%s131 + $0xa0] sm:$0xff]
    %v153 = vld [vmem:[%s131 + $0xa8] sm:$0xff]
    %v154 = vld [vmem:[%s131 + $0xb0] sm:$0xff]
    %v155 = vld [vmem:[%s131 + $0xb8] sm:$0xff]
    %v156 = vld [vmem:[%s131 + $0xc0] sm:$0xff]
    %v157 = vld [vmem:[%s131 + $0xc8] sm:$0xff]
    %v158 = vld [vmem:[%s131 + $0xd0] sm:$0xff]
    %v159 = vld [vmem:[%s131 + $0xd8] sm:$0xff]
    %v160 = vld [vmem:[%s131 + $0xe0] sm:$0xff]
    %v161 = vld [vmem:[%s131 + $0xe8] sm:$0xff]
    %v162 = vld [vmem:[%s131 + $0xf0] sm:$0xff]
    %v163 = vld [vmem:[%s131 + $0xf8] sm:$0xff]
    %164 = vmatprep.subr.mxu0 0.0
    %165 = vmatpush1.msra.mxu0 %v132
    %166 = vmatprep.subr.mxu0 0.0
    %167 = vmatpush1.msra.mxu0 %v133
    %168 = vmatprep.subr.mxu0 0.0
    %169 = vmatpush1.msra.mxu0 %v134
    %170 = vmatprep.subr.mxu0 0.0
    %171 = vmatpush1.msra.mxu0 %v135
    %172 = vmatprep.subr.mxu0 0.0
    %173 = vmatpush1.msra.mxu0 %v136
    %174 = vmatprep.subr.mxu0 0.0
    %175 = vmatpush1.msra.mxu0 %v137
    %176 = vmatprep.subr.mxu0 0.0
    %177 = vmatpush1.msra.mxu0 %v138
    %178 = vmatprep.subr.mxu0 0.0
    %179 = vmatpush1.msra.mxu0 %v139
    %180 = vmatprep.subr.mxu0 0.0
    %181 = vmatpush1.msra.mxu0 %v140
    %182 = vmatprep.subr.mxu0 0.0
    %183 = vmatpush1.msra.mxu0 %v141
    %184 = vmatprep.subr.mxu0 0.0
    %185 = vmatpush1.msra.mxu0 %v142
    %186 = vmatprep.subr.mxu0 0.0
    %187 = vmatpush1.msra.mxu0 %v143
    %188 = vmatprep.subr.mxu0 0.0
    %189 = vmatpush1.msra.mxu0 %v144
    %190 = vmatprep.subr.mxu0 0.0
    %191 = vmatpush1.msra.mxu0 %v145
    %192 = vmatprep.subr.mxu0 0.0
    %193 = vmatpush1.msra.mxu0 %v146
    %194 = vmatprep.subr.mxu0 0.0
    %195 = vmatpush1.msra.mxu0 %v147
    %196 = vmatprep.subr.mxu0 0.0
    %197 = vmatpush1.msra.mxu0 %v148
    %198 = vmatprep.subr.mxu0 0.0
    %199 = vmatpush1.msra.mxu0 %v149
    %200 = vmatprep.subr.mxu0 0.0
    %201 = vmatpush1.msra.mxu0 %v150
    %202 = vmatprep.subr.mxu0 0.0
    %203 = vmatpush1.msra.mxu0 %v151
    %204 = vmatprep.subr.mxu0 0.0
    %205 = vmatpush1.msra.mxu0 %v152
    %206 = vmatprep.subr.mxu0 0.0
    %207 = vmatpush1.msra.mxu0 %v153
    %208 = vmatprep.subr.mxu0 0.0
    %209 = vmatpush1.msra.mxu0 %v154
    %210 = vmatprep.subr.mxu0 0.0
    %211 = vmatpush1.msra.mxu0 %v155
    %212 = vmatprep.subr.mxu0 0.0
    %213 = vmatpush1.msra.mxu0 %v156
    %214 = vmatprep.subr.mxu0 0.0
    %215 = vmatpush1.msra.mxu0 %v157
    %216 = vmatprep.subr.mxu0 0.0
    %217 = vmatpush1.msra.mxu0 %v158
    %218 = vmatprep.subr.mxu0 0.0
    %219 = vmatpush1.msra.mxu0 %v159
    %220 = vmatprep.subr.mxu0 0.0
    %221 = vmatpush1.msra.mxu0 %v160
    %222 = vmatprep.subr.mxu0 0.0
    %223 = vmatpush1.msra.mxu0 %v161
    %224 = vmatprep.subr.mxu0 0.0
    %225 = vmatpush1.msra.mxu0 %v162
    %226 = vmatprep.subr.mxu0 0.0
    %227 = vmatpush1.msra.mxu0 %v163
    %228 = vmatprep.mubr.f32.mxu0 %v26
    %229 = vmatmul.mubr.f32.gmra.mrb[0].mxu0 %v25
    %v230 = vpop.f32.mrb[0].mxu0
    %v231 = vadd.f32 0.0, %v230
    %v232 = vpop.f32.mrb[0].mxu0
    %233 = vdwg.mxu0
    %s234 = scalar_lea.vmem %s2, 8
    %235 = vst.msk [vmem:[%s234] sm:$0xff] %vm129, %v231
    %s236 = scalar_lea.vmem [#allocation2], 512
    %v237 = vld [vmem:[%s236] sm:$0xff]
    %v238 = vld [vmem:[%s236 + $0x8] sm:$0xff]
    %v239 = vld [vmem:[%s236 + $0x10] sm:$0xff]
    %v240 = vld [vmem:[%s236 + $0x18] sm:$0xff]
    %v241 = vld [vmem:[%s236 + $0x20] sm:$0xff]
    %v242 = vld [vmem:[%s236 + $0x28] sm:$0xff]
    %v243 = vld [vmem:[%s236 + $0x30] sm:$0xff]
    %v244 = vld [vmem:[%s236 + $0x38] sm:$0xff]
    %v245 = vld [vmem:[%s236 + $0x40] sm:$0xff]
    %v246 = vld [vmem:[%s236 + $0x48] sm:$0xff]
    %v247 = vld [vmem:[%s236 + $0x50] sm:$0xff]
    %v248 = vld [vmem:[%s236 + $0x58] sm:$0xff]
    %v249 = vld [vmem:[%s236 + $0x60] sm:$0xff]
    %v250 = vld [vmem:[%s236 + $0x68] sm:$0xff]
    %v251 = vld [vmem:[%s236 + $0x70] sm:$0xff]
    %v252 = vld [vmem:[%s236 + $0x78] sm:$0xff]
    %v253 = vld [vmem:[%s236 + $0x80] sm:$0xff]
    %v254 = vld [vmem:[%s236 + $0x88] sm:$0xff]
    %v255 = vld [vmem:[%s236 + $0x90] sm:$0xff]
    %v256 = vld [vmem:[%s236 + $0x98] sm:$0xff]
    %v257 = vld [vmem:[%s236 + $0xa0] sm:$0xff]
    %v258 = vld [vmem:[%s236 + $0xa8] sm:$0xff]
    %v259 = vld [vmem:[%s236 + $0xb0] sm:$0xff]
    %v260 = vld [vmem:[%s236 + $0xb8] sm:$0xff]
    %v261 = vld [vmem:[%s236 + $0xc0] sm:$0xff]
    %v262 = vld [vmem:[%s236 + $0xc8] sm:$0xff]
    %v263 = vld [vmem:[%s236 + $0xd0] sm:$0xff]
    %v264 = vld [vmem:[%s236 + $0xd8] sm:$0xff]
    %v265 = vld [vmem:[%s236 + $0xe0] sm:$0xff]
    %v266 = vld [vmem:[%s236 + $0xe8] sm:$0xff]
    %v267 = vld [vmem:[%s236 + $0xf0] sm:$0xff]
    %v268 = vld [vmem:[%s236 + $0xf8] sm:$0xff]
    %269 = vmatprep.subr.mxu0 0.0
    %270 = vmatpush1.msra.mxu0 %v237
    %271 = vmatprep.subr.mxu0 0.0
    %272 = vmatpush1.msra.mxu0 %v238
    %273 = vmatprep.subr.mxu0 0.0
    %274 = vmatpush1.msra.mxu0 %v239
    %275 = vmatprep.subr.mxu0 0.0
    %276 = vmatpush1.msra.mxu0 %v240
    %277 = vmatprep.subr.mxu0 0.0
    %278 = vmatpush1.msra.mxu0 %v241
    %279 = vmatprep.subr.mxu0 0.0
    %280 = vmatpush1.msra.mxu0 %v242
    %281 = vmatprep.subr.mxu0 0.0
    %282 = vmatpush1.msra.mxu0 %v243
    %283 = vmatprep.subr.mxu0 0.0
    %284 = vmatpush1.msra.mxu0 %v244
    %285 = vmatprep.subr.mxu0 0.0
    %286 = vmatpush1.msra.mxu0 %v245
    %287 = vmatprep.subr.mxu0 0.0
    %288 = vmatpush1.msra.mxu0 %v246
    %289 = vmatprep.subr.mxu0 0.0
    %290 = vmatpush1.msra.mxu0 %v247
    %291 = vmatprep.subr.mxu0 0.0
    %292 = vmatpush1.msra.mxu0 %v248
    %293 = vmatprep.subr.mxu0 0.0
    %294 = vmatpush1.msra.mxu0 %v249
    %295 = vmatprep.subr.mxu0 0.0
    %296 = vmatpush1.msra.mxu0 %v250
    %297 = vmatprep.subr.mxu0 0.0
    %298 = vmatpush1.msra.mxu0 %v251
    %299 = vmatprep.subr.mxu0 0.0
    %300 = vmatpush1.msra.mxu0 %v252
    %301 = vmatprep.subr.mxu0 0.0
    %302 = vmatpush1.msra.mxu0 %v253
    %303 = vmatprep.subr.mxu0 0.0
    %304 = vmatpush1.msra.mxu0 %v254
    %305 = vmatprep.subr.mxu0 0.0
    %306 = vmatpush1.msra.mxu0 %v255
    %307 = vmatprep.subr.mxu0 0.0
    %308 = vmatpush1.msra.mxu0 %v256
    %309 = vmatprep.subr.mxu0 0.0
    %310 = vmatpush1.msra.mxu0 %v257
    %311 = vmatprep.subr.mxu0 0.0
    %312 = vmatpush1.msra.mxu0 %v258
    %313 = vmatprep.subr.mxu0 0.0
    %314 = vmatpush1.msra.mxu0 %v259
    %315 = vmatprep.subr.mxu0 0.0
    %316 = vmatpush1.msra.mxu0 %v260
    %317 = vmatprep.subr.mxu0 0.0
    %318 = vmatpush1.msra.mxu0 %v261
    %319 = vmatprep.subr.mxu0 0.0
    %320 = vmatpush1.msra.mxu0 %v262
    %321 = vmatprep.subr.mxu0 0.0
    %322 = vmatpush1.msra.mxu0 %v263
    %323 = vmatprep.subr.mxu0 0.0
    %324 = vmatpush1.msra.mxu0 %v264
    %325 = vmatprep.subr.mxu0 0.0
    %326 = vmatpush1.msra.mxu0 %v265
    %327 = vmatprep.subr.mxu0 0.0
    %328 = vmatpush1.msra.mxu0 %v266
    %329 = vmatprep.subr.mxu0 0.0
    %330 = vmatpush1.msra.mxu0 %v267
    %331 = vmatprep.subr.mxu0 0.0
    %332 = vmatpush1.msra.mxu0 %v268
    %333 = vmatprep.mubr.f32.mxu0 %v26
    %334 = vmatmul.mubr.f32.gmra.mrb[0].mxu0 %v25
    %v335 = vpop.f32.mrb[0].mxu0
    %v336 = vadd.f32 0.0, %v335
    %v337 = vpop.f32.mrb[0].mxu0
    %338 = vdwg.mxu0
    %s339 = scalar_lea.vmem %s2, 16
    %340 = vst.msk [vmem:[%s339] sm:$0xff] %vm129, %v336
    // Predicated region
    $region14: #{fovea_cropper_forward.1} parent=1 // pred_check
      _
    $region15: #{fovea_cropper_forward.1} parent=1 // pred_check_branch
      %342 = sbr.rel (0) target = $region17
    $region16: #{fovea_cropper_forward.1} parent=1 // pred_region
      _
    $region17: #{fovea_cropper_forward.1} parent=1 // pred_fallthru
      _
    // Predicated region
    $region18: #{fovea_cropper_forward.1} parent=1 // pred_check
      _
    $region19: #{fovea_cropper_forward.1} parent=1 // pred_check_branch
      %344 = sbr.rel (0) target = $region21
    $region20: #{fovea_cropper_forward.1} parent=1 // pred_region
      _
    $region21: #{fovea_cropper_forward.1} parent=1 // pred_fallthru
      _
    %345 = vsyncpa [#allocation3], 1

</llo_original>
